<compile_context>
chip_gen: v7x
topology: tpu7x:2x2x1
jax: 0.10.0
libtpu: 0.0.40
codegen_flags: <defaults>
</compile_context>

<pallas_src>
import jax
import jax.numpy as jnp
from jax.experimental import pallas as pl
from jax.experimental.pallas import tpu as pltpu

H_PAD = 128   # padded hidden-lane width (per GRU gate and for the h_new output)
V_PAD = 128   # padded vocab-lane width for the prediction output


def decoder_attention_kernel(
    tok_ref, enc_ref, keys_ref, hid_ref, emb_tbl_ref,
    wi_emb_ref, w_wtd_ref, w_h_ref, w_out_h_ref, b_ref,
    pred_ref, hnew_ref,
):
    B, S, E = enc_ref.shape
    HP = hnew_ref.shape[1]            # padded hidden width (128)
    VP = pred_ref.shape[1]            # padded vocab width (128)
    H = w_h_ref.shape[0]              # true dec_hid_dim
    V, EMB = emb_tbl_ref.shape
    G = 3 * HP                        # fused gate width (r, z, n), 128 lanes each
    f32 = jnp.float32
    bf16 = jnp.bfloat16

    enc = enc_ref[...]                # [B, S, E] f32 (activations stay f32)
    h_pad = hid_ref[...]              # [B, HP] f32 (zeros past H)
    h_bf = h_pad[:, :H].astype(bf16)  # true-H hidden for the matmul K dim

    # ---- embedding lookup fused in-kernel: one-hot @ bf16 table on the MXU ----
    # (exact: the single selected row is just the bf16-cast table row)
    tok = tok_ref[...]                                                   # [B, 1] int32
    onehot = (jax.lax.broadcasted_iota(jnp.int32, (B, V), 1) == tok)
    emb_bf = jnp.dot(onehot.astype(f32).astype(bf16), emb_tbl_ref[...],
                     preferred_element_type=f32).astype(bf16)            # [B, EMB]

    # ---- hidden-path fused matmul: GRU hidden gates + attention query proj ----
    h_all = jnp.dot(h_bf, w_h_ref[...], preferred_element_type=f32)      # [B, 3*HP + HP]
    gh = h_all[:, :G]                                                    # [B, 3*HP]
    h_proj = h_all[:, G:G + H]                                           # [B, H]

    # ---- additive attention; keys = enc @ wa_e + ba precomputed per sequence ----
    energy = jnp.tanh(keys_ref[...] + h_proj[:, None, :])                # [B, S, H]
    va = b_ref[0:1, 4 * HP + VP:4 * HP + VP + H]                         # [1, H]
    scores = jnp.sum(energy * va[None, :, :], axis=-1)                   # [B, S]
    m = jnp.max(scores, axis=-1, keepdims=True)
    expw = jnp.exp(scores - m)
    attn = expw / jnp.sum(expw, axis=-1, keepdims=True)                  # [B, S]

    # ---- weighted context on the VPU/XLU (no M=1 batched MXU matmuls) ----
    weighted = jnp.sum(attn[:, :, None] * enc, axis=1)                   # [B, E] f32
    wtd_bf = weighted.astype(bf16)

    # ---- weighted-path fused matmul: GRU input gates (enc rows) + out-proj enc rows ----
    wtd_all = jnp.dot(wtd_bf, w_wtd_ref[...], preferred_element_type=f32)  # [B, 3*HP + VP]

    # ---- single-step GRU cell, gates fused & 128-padded per gate (order r,z,n) ----
    gi = (jnp.dot(emb_bf, wi_emb_ref[...], preferred_element_type=f32)
          + wtd_all[:, :G]
          + b_ref[0:1, 0:G])                                             # [B, 3*HP]
    r = jax.nn.sigmoid(gi[:, 0:HP] + gh[:, 0:HP])
    z = jax.nn.sigmoid(gi[:, HP:2 * HP] + gh[:, HP:2 * HP])
    n = jnp.tanh(gi[:, 2 * HP:G] + r * (gh[:, 2 * HP:G] + b_ref[0:1, G:4 * HP]))
    h_new = (1.0 - z) * n + z * h_pad                                    # [B, HP], zeros past H

    # ---- output projection (duplicated h_new rows of self.out pre-folded on host) ----
    pred = (jnp.dot(h_new[:, :H].astype(bf16), w_out_h_ref[...],
                    preferred_element_type=f32)
            + wtd_all[:, G:G + VP]
            + b_ref[0:1, 4 * HP:4 * HP + VP])                            # [B, VP]

    pred_ref[...] = pred                                                 # lane-dense [B, 128]
    hnew_ref[...] = h_new                                                # lane-dense [B, 128]


def prepare_fused_params(params):
    """One-time host-side weight fusion / packing.

    bf16 cast happens BEFORE zero padding so padded lanes are exactly 0.
    Hidden-side weights keep true-H rows (no zero row padding in HBM)."""
    E = params["wa_e"].shape[0]
    H = params["wa_h"].shape[0]
    EMB = params["embedding"].shape[1]
    V = params["b_out"].shape[1]
    assert EMB == H, "module requires emb_dim == dec_hid_dim (self.out input width)"
    assert H <= H_PAD and V <= V_PAD

    bf16 = jnp.bfloat16
    f32 = jnp.float32

    def pad_cols(w, width):
        return jnp.pad(w, ((0, 0), (0, width - w.shape[1])))

    def fuse_gates(wr, wz, wn):   # per-gate 128-lane padded columns, order (r, z, n)
        return jnp.concatenate([pad_cols(wr.astype(bf16), H_PAD),
                                pad_cols(wz.astype(bf16), H_PAD),
                                pad_cols(wn.astype(bf16), H_PAD)], axis=1)

    wi = fuse_gates(params["w_ir"], params["w_iz"], params["w_in"])      # [EMB+E, 3*H_PAD]
    wh = fuse_gates(params["w_hr"], params["w_hz"], params["w_hn"])      # [H,     3*H_PAD]

    w_out = params["w_out"]
    w_out_h = pad_cols((w_out[:H] + w_out[H:2 * H]).astype(bf16), V_PAD)   # folded h rows
    w_out_enc = pad_cols(w_out[2 * H:].astype(bf16), V_PAD)                # [E, V_PAD]

    # packed matmul slabs
    wi_emb = wi[:EMB]                                                      # [EMB, 3*H_PAD]
    w_wtd = jnp.concatenate([wi[EMB:EMB + E], w_out_enc], axis=1)          # [E, 3*H_PAD+V_PAD]
    w_h = jnp.concatenate([wh, pad_cols(params["wa_h"].astype(bf16), H_PAD)],
                          axis=1)                                          # [H, 3*H_PAD+H_PAD]

    # packed bias row (f32): [bi(r,z,n) | b_hn | b_out | va], 128-lane aligned slots
    bi = jnp.concatenate(
        [pad_cols((params["b_ir"] + params["b_hr"]).astype(f32), H_PAD),   # b_r pre-summed
         pad_cols((params["b_iz"] + params["b_hz"]).astype(f32), H_PAD),   # b_z pre-summed
         pad_cols(params["b_in"].astype(f32), H_PAD)], axis=1)
    bhn = pad_cols(params["b_hn"].astype(f32), H_PAD)
    b_out = pad_cols(params["b_out"].astype(f32), V_PAD)
    va = pad_cols(params["va"].astype(f32), H_PAD)
    b_all = jnp.concatenate([bi, bhn, b_out, va], axis=1)                  # [1, 4*H_PAD+V_PAD+H_PAD]

    return dict(
        emb_tbl=params["embedding"].astype(bf16),
        wa_e=params["wa_e"].astype(bf16),     # used only in the wrapper key hoist
        ba=params["ba"].astype(f32),          # folded into enc_keys in the wrapper
        wi_emb=wi_emb, w_wtd=w_wtd, w_h=w_h, w_out_h=w_out_h, b_all=b_all,
        dims=(E, H, EMB, V))


def decoder_with_attention_forward(input_tokens, hidden, encoder_outputs, params,
                                   fused=None, enc_bse=None, enc_keys=None):
    """input_tokens: [B] int, hidden: [1, B, H], encoder_outputs: [S, B, E].

    `enc_bse` / `enc_keys` (attention keys enc @ wa_e + ba) depend only on the
    source sequence — pass them back in when looping over decode steps so they
    are computed once per sequence, not once per step."""
    if fused is None:
        fused = prepare_fused_params(params)
    E, H, EMB, V = fused["dims"]
    S, B, _ = encoder_outputs.shape

    if enc_bse is None:
        enc_bse = jnp.transpose(encoder_outputs, (1, 0, 2)).astype(jnp.float32)  # [B,S,E]
    if enc_keys is None:
        enc_keys = (jnp.einsum("bse,eh->bsh", enc_bse.astype(jnp.bfloat16),
                               fused["wa_e"], preferred_element_type=jnp.float32)
                    + fused["ba"][None, :, :])                                   # [B,S,H]

    tok = input_tokens.astype(jnp.int32).reshape(B, 1)
    h_pad = jnp.pad(hidden[0].astype(jnp.float32), ((0, 0), (0, H_PAD - H)))     # [B,H_PAD]

    inputs = (tok, enc_bse, enc_keys, h_pad,
              fused["emb_tbl"], fused["wi_emb"], fused["w_wtd"], fused["w_h"],
              fused["w_out_h"], fused["b_all"])

    # honest per-call cost (weights counted once; this is a single-step call)
    flops = 2 * B * (V * EMB                       # one-hot embedding matmul
                     + H * (3 * H_PAD + H_PAD)     # hidden-path fused matmul
                     + EMB * 3 * H_PAD             # embedding gate matmul
                     + E * (3 * H_PAD + V_PAD)     # weighted-path fused matmul
                     + H * V_PAD                   # output projection (hidden part)
                     + S * H + S * E)              # attention score + context reduces
    transcendentals = B * (S * H + S + 3 * H_PAD)
    bytes_accessed = int(sum(int(x.size) * x.dtype.itemsize for x in inputs)
                         + 4 * B * (V_PAD + H_PAD))

    pred_pad, h_new_pad = pl.pallas_call(
        decoder_attention_kernel,
        out_shape=(jax.ShapeDtypeStruct((B, V_PAD), jnp.float32),
                   jax.ShapeDtypeStruct((B, H_PAD), jnp.float32)),
        in_specs=[pl.BlockSpec(memory_space=pltpu.MemorySpace.VMEM)] * len(inputs),
        out_specs=(pl.BlockSpec(memory_space=pltpu.MemorySpace.VMEM),
                   pl.BlockSpec(memory_space=pltpu.MemorySpace.VMEM)),
        cost_estimate=pl.CostEstimate(flops=flops, transcendentals=transcendentals,
                                      bytes_accessed=bytes_accessed),
    )(*inputs)

    # slice back to the module's native widths
    return pred_pad[:, :V], h_new_pad[None, :, :H]    # (prediction [B,V], hidden [1,B,H])


def reference_forward(input_tokens, hidden, encoder_outputs, params):
    """Pure-JAX reference with the ORIGINAL f32 per-gate weights (validates the
    host-side gate fusion, bias folding, w_out fold and bf16 weight cast)."""
    hp = jax.lax.Precision.HIGHEST
    dot = lambda a, w: jnp.dot(a, w, precision=hp)
    emb = params["embedding"][input_tokens]
    h = hidden[0]
    e_proj = jnp.einsum("sbe,eh->sbh", encoder_outputs, params["wa_e"], precision=hp)
    h_proj = dot(h, params["wa_h"])
    energy = jnp.tanh(e_proj + h_proj[None] + params["ba"][None])
    scores = jnp.sum(energy * params["va"][None], axis=-1)          # [S, B]
    attn = jax.nn.softmax(scores, axis=0)
    weighted = jnp.einsum("sb,sbe->be", attn, encoder_outputs, precision=hp)
    x = jnp.concatenate([emb, weighted], axis=1)
    r = jax.nn.sigmoid(dot(x, params["w_ir"]) + params["b_ir"]
                       + dot(h, params["w_hr"]) + params["b_hr"])
    z = jax.nn.sigmoid(dot(x, params["w_iz"]) + params["b_iz"]
                       + dot(h, params["w_hz"]) + params["b_hz"])
    n = jnp.tanh(dot(x, params["w_in"]) + params["b_in"]
                 + r * (dot(h, params["w_hn"]) + params["b_hn"]))
    h_new = (1.0 - z) * n + z * h
    answer = jnp.concatenate([h_new, h_new, weighted], axis=1)
    pred = dot(answer, params["w_out"]) + params["b_out"]
    return pred, h_new[None]


if __name__ == "__main__":
    S, B = 8, 8          # src_len, batch
    E = 32               # enc_hid_dim
    H = 32               # dec_hid_dim
    EMB = 32             # emb_dim (== dec_hid_dim, required by self.out shape)
    V = 64               # output_dim

    key = jax.random.PRNGKey(0)
    keys = jax.random.split(key, 24)
    w = lambda k, shape: 0.1 * jax.random.normal(k, shape, jnp.float32)

    params = {
        "embedding": w(keys[0], (V, EMB)),
        "wa_e": w(keys[1], (E, H)),
        "wa_h": w(keys[2], (H, H)),
        "ba":   w(keys[3], (1, H)),
        "va":   w(keys[4], (1, H)),
        "w_ir": w(keys[5], (EMB + E, H)),
        "w_iz": w(keys[6], (EMB + E, H)),
        "w_in": w(keys[7], (EMB + E, H)),
        "w_hr": w(keys[8], (H, H)),
        "w_hz": w(keys[9], (H, H)),
        "w_hn": w(keys[10], (H, H)),
        "b_ir": w(keys[11], (1, H)),
        "b_iz": w(keys[12], (1, H)),
        "b_in": w(keys[13], (1, H)),
        "b_hr": w(keys[14], (1, H)),
        "b_hz": w(keys[15], (1, H)),
        "b_hn": w(keys[16], (1, H)),
        "w_out": w(keys[17], (H + EMB + E, V)),
        "b_out": w(keys[18], (1, V)),
    }

    input_tokens = jax.random.randint(keys[19], (B,), 0, V)
    hidden = w(keys[20], (1, B, H))
    encoder_outputs = w(keys[21], (S, B, E))

    fused = prepare_fused_params(params)          # one-time host-side fusion (bf16, packed)
    pred, h_new = decoder_with_attention_forward(
        input_tokens, hidden, encoder_outputs, params, fused=fused)
    jax.block_until_ready((pred, h_new))

    pred_ref, h_ref = reference_forward(input_tokens, hidden, encoder_outputs, params)
    assert pred.shape == (B, V) and h_new.shape == (1, B, H)
    # bf16-class weight precision (documented): tolerance relaxed vs the f32 kernel
    assert jnp.allclose(pred, pred_ref, atol=5e-3, rtol=5e-3)
    assert jnp.allclose(h_new, h_ref, atol=5e-3, rtol=5e-3)

    print("KERNEL_OK")
</pallas_src>

<mosaic_0001>
module attributes {stable_mosaic.version = 11 : i64} {
  func.func @decoder_attention_kernel(%arg0: memref<8x1xi32, #tpu.memory_space<vmem>>, %arg1: memref<8x8x32xf32, #tpu.memory_space<vmem>>, %arg2: memref<8x8x32xf32, #tpu.memory_space<vmem>>, %arg3: memref<8x128xf32, #tpu.memory_space<vmem>>, %arg4: memref<64x32xbf16, #tpu.memory_space<vmem>>, %arg5: memref<32x384xbf16, #tpu.memory_space<vmem>>, %arg6: memref<32x512xbf16, #tpu.memory_space<vmem>>, %arg7: memref<32x512xbf16, #tpu.memory_space<vmem>>, %arg8: memref<32x128xbf16, #tpu.memory_space<vmem>>, %arg9: memref<1x768xf32, #tpu.memory_space<vmem>>, %arg10: memref<8x128xf32, #tpu.memory_space<vmem>>, %arg11: memref<8x128xf32, #tpu.memory_space<vmem>>) attributes {dimension_semantics = [], scalar_prefetch = 0 : i64, scratch_operands = 0 : i64, tpu.core_type = #tpu.core_type<tc>} {
    %c0 = arith.constant 0 : index
    %c0_0 = arith.constant 0 : index
    %c0_1 = arith.constant 0 : index
    %0 = vector.load %arg1[%c0, %c0_0, %c0_1] : memref<8x8x32xf32, #tpu.memory_space<vmem>>, vector<8x8x32xf32>
    %c0_2 = arith.constant 0 : index
    %c0_3 = arith.constant 0 : index
    %1 = vector.load %arg3[%c0_2, %c0_3] : memref<8x128xf32, #tpu.memory_space<vmem>>, vector<8x128xf32>
    %2 = vector.extract_strided_slice %1 {offsets = [0, 0], sizes = [8, 32], strides = [1, 1]} : vector<8x128xf32> to vector<8x32xf32>
    %3 = arith.truncf %2 : vector<8x32xf32> to vector<8x32xbf16>
    %c0_4 = arith.constant 0 : index
    %c0_5 = arith.constant 0 : index
    %4 = vector.load %arg0[%c0_4, %c0_5] : memref<8x1xi32, #tpu.memory_space<vmem>>, vector<8x1xi32>
    %5 = tpu.iota {dimensions = array<i32: 1>} : vector<8x64xi32>
    %6 = vector.broadcast %4 : vector<8x1xi32> to vector<8x64xi32>
    %7 = arith.cmpi eq, %5, %6 : vector<8x64xi32>
    %8 = arith.extui %7 : vector<8x64xi1> to vector<8x64xi32>
    %9 = arith.sitofp %8 : vector<8x64xi32> to vector<8x64xf32>
    %10 = arith.truncf %9 : vector<8x64xf32> to vector<8x64xbf16>
    %c0_6 = arith.constant 0 : index
    %c0_7 = arith.constant 0 : index
    %11 = vector.load %arg4[%c0_6, %c0_7] : memref<64x32xbf16, #tpu.memory_space<vmem>>, vector<64x32xbf16>
    %cst = arith.constant dense<0.000000e+00> : vector<8x32xf32>
    %12 = tpu.matmul %10, %11, %cst {dimension_numbers = #tpu.dot_dimension_numbers<[1], [0], [0], [1], [0, 0, 1, 1], [], []>} : vector<8x64xbf16>, vector<64x32xbf16>, vector<8x32xf32> -> vector<8x32xf32>
    %13 = arith.truncf %12 : vector<8x32xf32> to vector<8x32xbf16>
    %c0_8 = arith.constant 0 : index
    %c0_9 = arith.constant 0 : index
    %14 = vector.load %arg7[%c0_8, %c0_9] : memref<32x512xbf16, #tpu.memory_space<vmem>>, vector<32x512xbf16>
    %cst_10 = arith.constant dense<0.000000e+00> : vector<8x512xf32>
    %15 = tpu.matmul %3, %14, %cst_10 {dimension_numbers = #tpu.dot_dimension_numbers<[1], [0], [0], [1], [0, 0, 1, 1], [], []>} : vector<8x32xbf16>, vector<32x512xbf16>, vector<8x512xf32> -> vector<8x512xf32>
    %16 = vector.extract_strided_slice %15 {offsets = [0, 0], sizes = [8, 384], strides = [1, 1]} : vector<8x512xf32> to vector<8x384xf32>
    %17 = vector.extract_strided_slice %15 {offsets = [0, 384], sizes = [8, 32], strides = [1, 1]} : vector<8x512xf32> to vector<8x32xf32>
    %c0_11 = arith.constant 0 : index
    %c0_12 = arith.constant 0 : index
    %c0_13 = arith.constant 0 : index
    %18 = vector.load %arg2[%c0_11, %c0_12, %c0_13] : memref<8x8x32xf32, #tpu.memory_space<vmem>>, vector<8x8x32xf32>
    %19 = vector.shape_cast %17 : vector<8x32xf32> to vector<8x1x32xf32>
    %20 = vector.broadcast %19 : vector<8x1x32xf32> to vector<8x8x32xf32>
    %21 = arith.addf %18, %20 : vector<8x8x32xf32>
    %22 = math.tanh %21 : vector<8x8x32xf32>
    %c0_14 = arith.constant 0 : index
    %c640 = arith.constant 640 : index
    %23 = vector.load %arg9[%c0_14, %c640] : memref<1x768xf32, #tpu.memory_space<vmem>>, vector<1x32xf32>
    %24 = vector.shape_cast %23 : vector<1x32xf32> to vector<1x1x32xf32>
    %25 = vector.broadcast %24 : vector<1x1x32xf32> to vector<8x8x32xf32>
    %26 = arith.mulf %22, %25 : vector<8x8x32xf32>
    %cst_15 = arith.constant dense<0.000000e+00> : vector<8x8xf32>
    %27 = vector.multi_reduction <add>, %26, %cst_15 [2] : vector<8x8x32xf32> to vector<8x8xf32>
    %cst_16 = arith.constant dense<0xFF800000> : vector<8xf32>
    %28 = vector.multi_reduction <maximumf>, %27, %cst_16 [1] : vector<8x8xf32> to vector<8xf32>
    %29 = vector.shape_cast %28 : vector<8xf32> to vector<8x1xf32>
    %30 = vector.broadcast %29 : vector<8x1xf32> to vector<8x8xf32>
    %31 = arith.subf %27, %30 : vector<8x8xf32>
    %32 = math.exp %31 : vector<8x8xf32>
    %cst_17 = arith.constant dense<0.000000e+00> : vector<8xf32>
    %33 = vector.multi_reduction <add>, %32, %cst_17 [1] : vector<8x8xf32> to vector<8xf32>
    %34 = vector.shape_cast %33 : vector<8xf32> to vector<8x1xf32>
    %35 = vector.broadcast %34 : vector<8x1xf32> to vector<8x8xf32>
    %36 = arith.divf %32, %35 : vector<8x8xf32>
    %37 = vector.shape_cast %36 : vector<8x8xf32> to vector<8x8x1xf32>
    %38 = vector.broadcast %37 : vector<8x8x1xf32> to vector<8x8x32xf32>
    %39 = arith.mulf %38, %0 : vector<8x8x32xf32>
    %cst_18 = arith.constant dense<0.000000e+00> : vector<8x32xf32>
    %40 = vector.multi_reduction <add>, %39, %cst_18 [1] : vector<8x8x32xf32> to vector<8x32xf32>
    %41 = arith.truncf %40 : vector<8x32xf32> to vector<8x32xbf16>
    %c0_19 = arith.constant 0 : index
    %c0_20 = arith.constant 0 : index
    %42 = vector.load %arg6[%c0_19, %c0_20] : memref<32x512xbf16, #tpu.memory_space<vmem>>, vector<32x512xbf16>
    %cst_21 = arith.constant dense<0.000000e+00> : vector<8x512xf32>
    %43 = tpu.matmul %41, %42, %cst_21 {dimension_numbers = #tpu.dot_dimension_numbers<[1], [0], [0], [1], [0, 0, 1, 1], [], []>} : vector<8x32xbf16>, vector<32x512xbf16>, vector<8x512xf32> -> vector<8x512xf32>
    %c0_22 = arith.constant 0 : index
    %c0_23 = arith.constant 0 : index
    %44 = vector.load %arg5[%c0_22, %c0_23] : memref<32x384xbf16, #tpu.memory_space<vmem>>, vector<32x384xbf16>
    %cst_24 = arith.constant dense<0.000000e+00> : vector<8x384xf32>
    %45 = tpu.matmul %13, %44, %cst_24 {dimension_numbers = #tpu.dot_dimension_numbers<[1], [0], [0], [1], [0, 0, 1, 1], [], []>} : vector<8x32xbf16>, vector<32x384xbf16>, vector<8x384xf32> -> vector<8x384xf32>
    %46 = vector.extract_strided_slice %43 {offsets = [0, 0], sizes = [8, 384], strides = [1, 1]} : vector<8x512xf32> to vector<8x384xf32>
    %47 = arith.addf %45, %46 : vector<8x384xf32>
    %c0_25 = arith.constant 0 : index
    %c0_26 = arith.constant 0 : index
    %48 = vector.load %arg9[%c0_25, %c0_26] : memref<1x768xf32, #tpu.memory_space<vmem>>, vector<1x384xf32>
    %49 = vector.broadcast %48 : vector<1x384xf32> to vector<8x384xf32>
    %50 = arith.addf %47, %49 : vector<8x384xf32>
    %51 = vector.extract_strided_slice %50 {offsets = [0, 0], sizes = [8, 128], strides = [1, 1]} : vector<8x384xf32> to vector<8x128xf32>
    %52 = vector.extract_strided_slice %16 {offsets = [0, 0], sizes = [8, 128], strides = [1, 1]} : vector<8x384xf32> to vector<8x128xf32>
    %53 = arith.addf %51, %52 : vector<8x128xf32>
    %54 = arith.negf %53 : vector<8x128xf32>
    %55 = math.exp %54 : vector<8x128xf32>
    %cst_27 = arith.constant 1.000000e+00 : f32
    %56 = vector.broadcast %cst_27 : f32 to vector<8x128xf32>
    %57 = arith.addf %56, %55 : vector<8x128xf32>
    %58 = arith.divf %56, %57 : vector<8x128xf32>
    %59 = vector.extract_strided_slice %50 {offsets = [0, 128], sizes = [8, 128], strides = [1, 1]} : vector<8x384xf32> to vector<8x128xf32>
    %60 = vector.extract_strided_slice %16 {offsets = [0, 128], sizes = [8, 128], strides = [1, 1]} : vector<8x384xf32> to vector<8x128xf32>
    %61 = arith.addf %59, %60 : vector<8x128xf32>
    %62 = arith.negf %61 : vector<8x128xf32>
    %63 = math.exp %62 : vector<8x128xf32>
    %cst_28 = arith.constant 1.000000e+00 : f32
    %64 = vector.broadcast %cst_28 : f32 to vector<8x128xf32>
    %65 = arith.addf %64, %63 : vector<8x128xf32>
    %66 = arith.divf %64, %65 : vector<8x128xf32>
    %67 = vector.extract_strided_slice %50 {offsets = [0, 256], sizes = [8, 128], strides = [1, 1]} : vector<8x384xf32> to vector<8x128xf32>
    %68 = vector.extract_strided_slice %16 {offsets = [0, 256], sizes = [8, 128], strides = [1, 1]} : vector<8x384xf32> to vector<8x128xf32>
    %c0_29 = arith.constant 0 : index
    %c384 = arith.constant 384 : index
    %69 = vector.load %arg9[%c0_29, %c384] : memref<1x768xf32, #tpu.memory_space<vmem>>, vector<1x128xf32>
    %70 = vector.broadcast %69 : vector<1x128xf32> to vector<8x128xf32>
    %71 = arith.addf %68, %70 : vector<8x128xf32>
    %72 = arith.mulf %58, %71 : vector<8x128xf32>
    %73 = arith.addf %67, %72 : vector<8x128xf32>
    %74 = math.tanh %73 : vector<8x128xf32>
    %cst_30 = arith.constant 1.000000e+00 : f32
    %75 = vector.broadcast %cst_30 : f32 to vector<8x128xf32>
    %76 = arith.subf %75, %66 : vector<8x128xf32>
    %77 = arith.mulf %76, %74 : vector<8x128xf32>
    %78 = arith.mulf %66, %1 : vector<8x128xf32>
    %79 = arith.addf %77, %78 : vector<8x128xf32>
    %80 = vector.extract_strided_slice %79 {offsets = [0, 0], sizes = [8, 32], strides = [1, 1]} : vector<8x128xf32> to vector<8x32xf32>
    %81 = arith.truncf %80 : vector<8x32xf32> to vector<8x32xbf16>
    %c0_31 = arith.constant 0 : index
    %c0_32 = arith.constant 0 : index
    %82 = vector.load %arg8[%c0_31, %c0_32] : memref<32x128xbf16, #tpu.memory_space<vmem>>, vector<32x128xbf16>
    %cst_33 = arith.constant dense<0.000000e+00> : vector<8x128xf32>
    %83 = tpu.matmul %81, %82, %cst_33 {dimension_numbers = #tpu.dot_dimension_numbers<[1], [0], [0], [1], [0, 0, 1, 1], [], []>} : vector<8x32xbf16>, vector<32x128xbf16>, vector<8x128xf32> -> vector<8x128xf32>
    %84 = vector.extract_strided_slice %43 {offsets = [0, 384], sizes = [8, 128], strides = [1, 1]} : vector<8x512xf32> to vector<8x128xf32>
    %85 = arith.addf %83, %84 : vector<8x128xf32>
    %c0_34 = arith.constant 0 : index
    %c512 = arith.constant 512 : index
    %86 = vector.load %arg9[%c0_34, %c512] : memref<1x768xf32, #tpu.memory_space<vmem>>, vector<1x128xf32>
    %87 = vector.broadcast %86 : vector<1x128xf32> to vector<8x128xf32>
    %88 = arith.addf %85, %87 : vector<8x128xf32>
    %c0_35 = arith.constant 0 : index
    %c0_36 = arith.constant 0 : index
    %89 = vector.load %arg10[%c0_35, %c0_36] : memref<8x128xf32, #tpu.memory_space<vmem>>, vector<8x128xf32>
    tpu.vector_store %arg10[%c0_35, %c0_36], %88 {strides = array<i32>} : memref<8x128xf32, #tpu.memory_space<vmem>>, vector<8x128xf32>,
    %c0_37 = arith.constant 0 : index
    %c0_38 = arith.constant 0 : index
    %90 = vector.load %arg11[%c0_37, %c0_38] : memref<8x128xf32, #tpu.memory_space<vmem>>, vector<8x128xf32>
    tpu.vector_store %arg11[%c0_37, %c0_38], %79 {strides = array<i32>} : memref<8x128xf32, #tpu.memory_space<vmem>>, vector<8x128xf32>,
    return
  }
}

</mosaic_0001>

<llo_original>
// kernel: tpu_custom_call.1
$region0: #{tpu_custom_call.1}
  #allocation0 [shape = 'u32[]', space=smem, size = 0x4, offset = 0x4, fixed_abs, tag = 'smem constant byte address 0x4 - core index']
  #allocation1 [shape = 'u32[144,128]{1,0:T(1,128)}', space=vmem, size = 0x12000, scoped, tag = 'internal scratch']
  %s0 = inlined_call_operand.vmem [shape: s32[8,1], index: 0, kind: input, shape index: {}]
  %s1 = inlined_call_operand.hbm [shape: f32[8,8,32], index: 1, kind: input, shape index: {}]
  %s2 = inlined_call_operand.vmem [shape: f32[8,8,32], index: 2, kind: input, shape index: {}]
  %s3 = inlined_call_operand.hbm [shape: f32[8,128], index: 3, kind: input, shape index: {}]
  %s4 = inlined_call_operand.vmem [shape: bf16[64,32], index: 4, kind: input, shape index: {}]
  %s5 = inlined_call_operand.hbm [shape: bf16[32,384], index: 5, kind: input, shape index: {}]
  %s6 = inlined_call_operand.hbm [shape: bf16[32,512], index: 6, kind: input, shape index: {}]
  %s7 = inlined_call_operand.hbm [shape: bf16[32,512], index: 7, kind: input, shape index: {}]
  %s8 = inlined_call_operand.vmem [shape: bf16[32,128], index: 8, kind: input, shape index: {}]
  %s9 = inlined_call_operand.vmem [shape: f32[1,768], index: 9, kind: input, shape index: {}]
  %s10 = inlined_call_operand.hbm [shape: f32[8,128], index: 10, kind: output, shape index: {0}]
  %s11 = inlined_call_operand.hbm [shape: f32[8,128], index: 11, kind: output, shape index: {1}]
  %12 = xla_tuple %s10, %s11
  %s13 = sld [smem:[#allocation0]]
  $region78: #{tpu_custom_call.1} parent=0
    _
  %s15 = ssub.s32 1, %s13
  %s16 = scalar_select 0, %s15, %s13
  $region1: #{tpu_custom_call.1} parent=0
    #allocation2 [shape = 'u8[32768]{0}', space=vmem, size = 0x8000, scoped, tag = 'input window, operand 1, single buffered']
    #allocation3 [shape = 's32[1]{0}', space=sflag, size = 0x4, scoped, tag = 'scoped memory for tpu_custom_call.1']
    #allocation4 [shape = 's32[1]{0}', space=sflag, size = 0x4, scoped, tag = 'scoped memory for tpu_custom_call.1']
    #allocation5 [shape = 'u8[4096]{0}', space=vmem, size = 0x1000, scoped, tag = 'input window, operand 3, single buffered']
    #allocation6 [shape = 's32[1]{0}', space=sflag, size = 0x4, scoped, tag = 'scoped memory for tpu_custom_call.1']
    #allocation7 [shape = 'u8[24576]{0}', space=vmem, size = 0x6000, scoped, tag = 'input window, operand 5, single buffered']
    #allocation8 [shape = 'u8[32768]{0}', space=vmem, size = 0x8000, scoped, tag = 'input window, operand 6, single buffered']
    #allocation9 [shape = 's32[1]{0}', space=sflag, size = 0x4, scoped, tag = 'scoped memory for tpu_custom_call.1']
    #allocation10 [shape = 'u8[32768]{0}', space=vmem, size = 0x8000, scoped, tag = 'input window, operand 7, single buffered']
    #allocation11 [shape = 'u8[4096]{0}', space=vmem, size = 0x1000, scoped, tag = 'output window, operand 0, single buffered']
    #allocation12 [shape = 'u8[4096]{0}', space=vmem, size = 0x1000, scoped, tag = 'output window, operand 1, single buffered']
    #allocation13 [shape = 's32[1]{0}', space=sflag, size = 0x4, scoped, tag = 'scoped memory for tpu_custom_call.1']
    %17 = vsyncpa [#allocation3], 0
    %18 = vsyncpa [#allocation6], 0
    %19 = vsyncpa [#allocation9], 0
    %20 = vsyncpa [#allocation4], 0
    %21 = vsyncpa [#allocation13], 0
    // Predicated region
    $region2: #{tpu_custom_call.1} parent=1 // pred_check
      _
    $region3: #{tpu_custom_call.1} parent=1 // pred_check_branch
      %23 = sbr.rel (0) target = $region5
    $region4: #{tpu_custom_call.1} parent=1 // pred_region
      _
    $region5: #{tpu_custom_call.1} parent=1 // pred_fallthru
      _
    // Predicated region
    $region6: #{tpu_custom_call.1} parent=1 // pred_check
      _
    $region7: #{tpu_custom_call.1} parent=1 // pred_check_branch
      %25 = sbr.rel (0) target = $region9
    $region8: #{tpu_custom_call.1} parent=1 // pred_region
      %s27 = ssub.s32 1024, 1024
      %28 = vsyncadd [#allocation3], %s27
      %s29 = sshll.u32 [#allocation2], 4
      %s30 = int_to_ptr.vmem [resolvable:$true] %s29
      %35 = dma.hbm_to_vmem [thread:$0]  %s1, 1024, %s30, [#allocation3], 128, 128, 8
    $region9: #{tpu_custom_call.1} parent=1 // pred_fallthru
      _
    // Predicated region
    $region10: #{tpu_custom_call.1} parent=1 // pred_check
      _
    $region11: #{tpu_custom_call.1} parent=1 // pred_check_branch
      %37 = sbr.rel (0) target = $region13
    $region12: #{tpu_custom_call.1} parent=1 // pred_region
      _
    $region13: #{tpu_custom_call.1} parent=1 // pred_fallthru
      _
    // Predicated region
    $region14: #{tpu_custom_call.1} parent=1 // pred_check
      _
    $region15: #{tpu_custom_call.1} parent=1 // pred_check_branch
      %39 = sbr.rel (0) target = $region17
    $region16: #{tpu_custom_call.1} parent=1 // pred_region
      %s41 = ssub.s32 128, 128
      %42 = vsyncadd [#allocation6], %s41
      %s44 = sshll.u32 [#allocation5], 4
      %s45 = int_to_ptr.vmem [resolvable:$true] %s44
      %47 = dma.hbm_to_vmem [thread:$0]  %s3, 128, %s45, [#allocation6]
    $region17: #{tpu_custom_call.1} parent=1 // pred_fallthru
      _
    // Predicated region
    $region18: #{tpu_custom_call.1} parent=1 // pred_check
      _
    $region19: #{tpu_custom_call.1} parent=1 // pred_check_branch
      %49 = sbr.rel (0) target = $region21
    $region20: #{tpu_custom_call.1} parent=1 // pred_region
      _
    $region21: #{tpu_custom_call.1} parent=1 // pred_fallthru
      _
    // Predicated region
    $region22: #{tpu_custom_call.1} parent=1 // pred_check
      _
    $region23: #{tpu_custom_call.1} parent=1 // pred_check_branch
      %51 = sbr.rel (0) target = $region25
    $region24: #{tpu_custom_call.1} parent=1 // pred_region
      %s53 = ssub.s32 768, 768
      %54 = vsyncadd [#allocation6], %s53
      %s55 = sshll.u32 [#allocation7], 4
      %s56 = int_to_ptr.vmem [resolvable:$true] %s55
      %61 = dma.hbm_to_vmem [thread:$0]  %s5, 768, %s56, [#allocation6], 192, 192, 12
    $region25: #{tpu_custom_call.1} parent=1 // pred_fallthru
      _
    // Predicated region
    $region26: #{tpu_custom_call.1} parent=1 // pred_check
      _
    $region27: #{tpu_custom_call.1} parent=1 // pred_check_branch
      %63 = sbr.rel (0) target = $region29
    $region28: #{tpu_custom_call.1} parent=1 // pred_region
      %s65 = ssub.s32 1024, 1024
      %66 = vsyncadd [#allocation9], %s65
      %s67 = sshll.u32 [#allocation8], 4
      %s68 = int_to_ptr.vmem [resolvable:$true] %s67
      %73 = dma.hbm_to_vmem [thread:$0]  %s6, 1024, %s68, [#allocation9], 256, 256, 16
    $region29: #{tpu_custom_call.1} parent=1 // pred_fallthru
      _
    // Predicated region
    $region30: #{tpu_custom_call.1} parent=1 // pred_check
      _
    $region31: #{tpu_custom_call.1} parent=1 // pred_check_branch
      %75 = sbr.rel (0) target = $region33
    $region32: #{tpu_custom_call.1} parent=1 // pred_region
      %s77 = ssub.s32 1024, 1024
      %78 = vsyncadd [#allocation9], %s77
      %s79 = sshll.u32 [#allocation10], 4
      %s80 = int_to_ptr.vmem [resolvable:$true] %s79
      %85 = dma.hbm_to_vmem [thread:$0]  %s7, 1024, %s80, [#allocation9], 256, 256, 16
    $region33: #{tpu_custom_call.1} parent=1 // pred_fallthru
      _
    // Predicated region
    $region34: #{tpu_custom_call.1} parent=1 // pred_check
      _
    $region35: #{tpu_custom_call.1} parent=1 // pred_check_branch
      %87 = sbr.rel (0) target = $region37
    $region36: #{tpu_custom_call.1} parent=1 // pred_region
      _
    $region37: #{tpu_custom_call.1} parent=1 // pred_fallthru
      _
    // Predicated region
    $region38: #{tpu_custom_call.1} parent=1 // pred_check
      _
    $region39: #{tpu_custom_call.1} parent=1 // pred_check_branch
      %89 = sbr.rel (0) target = $region41
    $region40: #{tpu_custom_call.1} parent=1 // pred_region
      _
    $region41: #{tpu_custom_call.1} parent=1 // pred_fallthru
      _
    // Predicated region
    $region42: #{tpu_custom_call.1} parent=1 // pred_check
      _
    $region43: #{tpu_custom_call.1} parent=1 // pred_check_branch
      %91 = sbr.rel (0) target = $region45
    $region44: #{tpu_custom_call.1} parent=1 // pred_region
      %92 = dma.done [#allocation3], 1024
    $region45: #{tpu_custom_call.1} parent=1 // pred_fallthru
      _
    // Predicated region
    $region46: #{tpu_custom_call.1} parent=1 // pred_check
      _
    $region47: #{tpu_custom_call.1} parent=1 // pred_check_branch
      %94 = sbr.rel (0) target = $region49
    $region48: #{tpu_custom_call.1} parent=1 // pred_region
      %95 = dma.done [#allocation6], 128
    $region49: #{tpu_custom_call.1} parent=1 // pred_fallthru
      _
    // Predicated region
    $region50: #{tpu_custom_call.1} parent=1 // pred_check
      _
    $region51: #{tpu_custom_call.1} parent=1 // pred_check_branch
      %97 = sbr.rel (0) target = $region53
    $region52: #{tpu_custom_call.1} parent=1 // pred_region
      %98 = dma.done [#allocation6], 768
    $region53: #{tpu_custom_call.1} parent=1 // pred_fallthru
      _
    // Predicated region
    $region54: #{tpu_custom_call.1} parent=1 // pred_check
      _
    $region55: #{tpu_custom_call.1} parent=1 // pred_check_branch
      %100 = sbr.rel (0) target = $region57
    $region56: #{tpu_custom_call.1} parent=1 // pred_region
      %101 = dma.done [#allocation9], 1024
    $region57: #{tpu_custom_call.1} parent=1 // pred_fallthru
      _
    // Predicated region
    $region58: #{tpu_custom_call.1} parent=1 // pred_check
      _
    $region59: #{tpu_custom_call.1} parent=1 // pred_check_branch
      %103 = sbr.rel (0) target = $region61
    $region60: #{tpu_custom_call.1} parent=1 // pred_region
      %104 = dma.done [#allocation9], 1024
    $region61: #{tpu_custom_call.1} parent=1 // pred_fallthru
      _
    %v106 = vld [vmem:[#allocation2] sm:$0xff]
    %v107 = vld [vmem:[#allocation2 + $0x8] sm:$0xff]
    %v108 = vld [vmem:[#allocation2 + $0x10] sm:$0xff]
    %v109 = vld [vmem:[#allocation2 + $0x18] sm:$0xff]
    %v110 = vld [vmem:[#allocation2 + $0x20] sm:$0xff]
    %v111 = vld [vmem:[#allocation2 + $0x28] sm:$0xff]
    %v112 = vld [vmem:[#allocation2 + $0x30] sm:$0xff]
    %v113 = vld [vmem:[#allocation2 + $0x38] sm:$0xff]
    %v114 = vld [vmem:[#allocation5] sm:$0xff]
    %v115 = vpack.c.bf16 %v114, %v114
    %v116 = vld [vmem:[%s0] sm:$0xff]
    %v117 = vlaneseq
    %v118 = vand.u32 %v117, 127
    %119 = vset.pattern.permute.xlu0 0
    %120 = vperm.xlu0 %119, %v116
    %v121 = vpop.permute.xlu0 %120
    %vm122 = vcmp.eq.s32.totalorder %v118, %v121
    %v123 = vsel %vm122, 1, 0
    %v124 = vcvt.s32.f32 %v123
    %v125 = vpack.c.bf16 %v124, %v124
    %v126 = vld [vmem:[%s4] sm:$0xf]
    %v127 = vld [vmem:[%s4 + $0x4] sm:$0xf]
    %v128 = vld [vmem:[%s4 + $0x8] sm:$0xf]
    %v129 = vld [vmem:[%s4 + $0xc] sm:$0xf]
    %v130 = vld [vmem:[%s4 + $0x10] sm:$0xf]
    %v131 = vld [vmem:[%s4 + $0x14] sm:$0xf]
    %v132 = vld [vmem:[%s4 + $0x18] sm:$0xf]
    %v133 = vld [vmem:[%s4 + $0x1c] sm:$0xf]
    %v142 = vunpack.c.l.b16 %v126
    %v143 = vunpack.c.l.b16 %v127
    %v144 = vunpack.c.l.b16 %v128
    %v145 = vunpack.c.l.b16 %v129
    %v146 = vunpack.c.l.b16 %v130
    %v147 = vunpack.c.l.b16 %v131
    %v148 = vunpack.c.l.b16 %v132
    %v149 = vunpack.c.l.b16 %v133
    %v150 = vpack.c.b16 %v143, %v142
    %v151 = vpack.c.b16 %v145, %v144
    %v152 = vpack.c.b16 %v147, %v146
    %v153 = vpack.c.b16 %v149, %v148
    %vm158 = vcmask 523264
    %v160 = vsel %vm158, %v125, 0
    %162 = vmatprep.subr.bf16.mxu0 0
    %163 = vmatpush1.bf16.msra.mxu0 %v150
    %164 = vmatprep.subr.bf16.mxu0 0
    %165 = vmatpush1.bf16.msra.mxu0 %v151
    %166 = vmatprep.subr.bf16.mxu0 0
    %167 = vmatpush1.bf16.msra.mxu0 %v152
    %168 = vmatprep.subr.bf16.mxu0 0
    %169 = vmatpush1.bf16.msra.mxu0 %v153
    %170 = vmatprep.subr.bf16.mxu0 0
    %171 = vmatpush1.bf16.msra.mxu0 0
    %172 = vmatprep.subr.bf16.mxu0 0
    %173 = vmatpush1.bf16.msra.mxu0 0
    %174 = vmatprep.subr.bf16.mxu0 0
    %175 = vmatpush1.bf16.msra.mxu0 0
    %176 = vmatprep.subr.bf16.mxu0 0
    %177 = vmatpush1.bf16.msra.mxu0 0
    %178 = vmatprep.subr.bf16.mxu0 0
    %179 = vmatpush1.bf16.msra.mxu0 0
    %180 = vmatprep.subr.bf16.mxu0 0
    %181 = vmatpush1.bf16.msra.mxu0 0
    %182 = vmatprep.subr.bf16.mxu0 0
    %183 = vmatpush1.bf16.msra.mxu0 0
    %184 = vmatprep.subr.bf16.mxu0 0
    %185 = vmatpush1.bf16.msra.mxu0 0
    %186 = vmatprep.subr.bf16.mxu0 0
    %187 = vmatpush1.bf16.msra.mxu0 0
    %188 = vmatprep.subr.bf16.mxu0 0
    %189 = vmatpush1.bf16.msra.mxu0 0
    %190 = vmatprep.subr.bf16.mxu0 0
    %191 = vmatpush1.bf16.msra.mxu0 0
    %192 = vmatprep.subr.bf16.mxu0 0
    %193 = vmatpush1.bf16.msra.mxu0 0
    %194 = vmatprep.mubr.bf16.mxu0 0
    %195 = vmatmul.mubr.bf16.gmra.mrb[0].mxu0 %v160
    %v196 = vpop.f32.mrb[0].mxu0
    %v197 = vadd.f32 0.0, %v196
    %v198 = vpop.f32.mrb[0].mxu0
    %v199 = vpop.f32.mrb[0].mxu0
    %v200 = vpop.f32.mrb[0].mxu0
    %201 = vdwg.mxu0
    %v202 = vpack.c.bf16 %v197, %v197
    %v203 = vld [vmem:[#allocation10] sm:$0xff]
    %v204 = vld [vmem:[#allocation10 + $0x8] sm:$0xff]
    %v205 = vld [vmem:[#allocation10 + $0x10] sm:$0xff]
    %v206 = vld [vmem:[#allocation10 + $0x18] sm:$0xff]
    %v207 = vld [vmem:[#allocation10 + $0x20] sm:$0xff]
    %v208 = vld [vmem:[#allocation10 + $0x28] sm:$0xff]
    %v209 = vld [vmem:[#allocation10 + $0x30] sm:$0xff]
    %v210 = vld [vmem:[#allocation10 + $0x38] sm:$0xff]
    %v219 = vunpack.c.l.b16 %v203
    %v220 = vunpack.c.h.b16 %v203
    %v221 = vunpack.c.l.b16 %v204
    %v222 = vunpack.c.h.b16 %v204
    %v223 = vunpack.c.l.b16 %v205
    %v224 = vunpack.c.h.b16 %v205
    %v225 = vunpack.c.l.b16 %v206
    %v226 = vunpack.c.h.b16 %v206
    %v227 = vunpack.c.l.b16 %v207
    %v228 = vunpack.c.h.b16 %v207
    %v229 = vunpack.c.l.b16 %v208
    %v230 = vunpack.c.h.b16 %v208
    %v231 = vunpack.c.l.b16 %v209
    %v232 = vunpack.c.h.b16 %v209
    %v233 = vunpack.c.l.b16 %v210
    %v234 = vunpack.c.h.b16 %v210
    %v235 = vpack.c.b16 %v223, %v219
    %v236 = vpack.c.b16 %v224, %v220
    %v237 = vpack.c.b16 %v225, %v221
    %v238 = vpack.c.b16 %v226, %v222
    %v239 = vpack.c.b16 %v231, %v227
    %v240 = vpack.c.b16 %v232, %v228
    %v241 = vpack.c.b16 %v233, %v229
    %v242 = vpack.c.b16 %v234, %v230
    %vm251 = vcmask 261120
    %v253 = vsel %vm251, %v115, 0
    %255 = vmatprep.subr.bf16.mxu0 %v236
    %256 = vmatpush1.bf16.msra.mxu0 %v235
    %257 = vmatprep.subr.bf16.mxu0 %v240
    %258 = vmatpush1.bf16.msra.mxu0 %v239
    %259 = vmatprep.subr.bf16.mxu0 0
    %260 = vmatpush1.bf16.msra.mxu0 0
    %261 = vmatprep.subr.bf16.mxu0 0
    %262 = vmatpush1.bf16.msra.mxu0 0
    %263 = vmatprep.subr.bf16.mxu0 0
    %264 = vmatpush1.bf16.msra.mxu0 0
    %265 = vmatprep.subr.bf16.mxu0 0
    %266 = vmatpush1.bf16.msra.mxu0 0
    %267 = vmatprep.subr.bf16.mxu0 0
    %268 = vmatpush1.bf16.msra.mxu0 0
    %269 = vmatprep.subr.bf16.mxu0 0
    %270 = vmatpush1.bf16.msra.mxu0 0
    %271 = vmatprep.subr.bf16.mxu0 0
    %272 = vmatpush1.bf16.msra.mxu0 0
    %273 = vmatprep.subr.bf16.mxu0 0
    %274 = vmatpush1.bf16.msra.mxu0 0
    %275 = vmatprep.subr.bf16.mxu0 0
    %276 = vmatpush1.bf16.msra.mxu0 0
    %277 = vmatprep.subr.bf16.mxu0 0
    %278 = vmatpush1.bf16.msra.mxu0 0
    %279 = vmatprep.subr.bf16.mxu0 0
    %280 = vmatpush1.bf16.msra.mxu0 0
    %281 = vmatprep.subr.bf16.mxu0 0
    %282 = vmatpush1.bf16.msra.mxu0 0
    %283 = vmatprep.subr.bf16.mxu0 0
    %284 = vmatpush1.bf16.msra.mxu0 0
    %285 = vmatprep.subr.bf16.mxu0 0
    %286 = vmatpush1.bf16.msra.mxu0 0
    %287 = vmatprep.mubr.bf16.mxu0 0
    %288 = vmatmul.mubr.bf16.gmra.mrb[0].mxu0 %v253
    %v289 = vpop.f32.mrb[0].mxu0
    %v290 = vadd.f32 0.0, %v289
    %v291 = vpop.f32.mrb[0].mxu0
    %v292 = vadd.f32 0.0, %v291
    %v293 = vpop.f32.mrb[0].mxu0
    %v294 = vpop.f32.mrb[0].mxu0
    %295 = vdwg.mxu0
    %296 = vmatprep.subr.bf16.mxu0 %v238
    %297 = vmatpush1.bf16.msra.mxu0 %v237
    %298 = vmatprep.subr.bf16.mxu0 %v242
    %299 = vmatpush1.bf16.msra.mxu0 %v241
    %300 = vmatprep.subr.bf16.mxu0 0
    %301 = vmatpush1.bf16.msra.mxu0 0
    %302 = vmatprep.subr.bf16.mxu0 0
    %303 = vmatpush1.bf16.msra.mxu0 0
    %304 = vmatprep.subr.bf16.mxu0 0
    %305 = vmatpush1.bf16.msra.mxu0 0
    %306 = vmatprep.subr.bf16.mxu0 0
    %307 = vmatpush1.bf16.msra.mxu0 0
    %308 = vmatprep.subr.bf16.mxu0 0
    %309 = vmatpush1.bf16.msra.mxu0 0
    %310 = vmatprep.subr.bf16.mxu0 0
    %311 = vmatpush1.bf16.msra.mxu0 0
    %312 = vmatprep.subr.bf16.mxu0 0
    %313 = vmatpush1.bf16.msra.mxu0 0
    %314 = vmatprep.subr.bf16.mxu0 0
    %315 = vmatpush1.bf16.msra.mxu0 0
    %316 = vmatprep.subr.bf16.mxu0 0
    %317 = vmatpush1.bf16.msra.mxu0 0
    %318 = vmatprep.subr.bf16.mxu0 0
    %319 = vmatpush1.bf16.msra.mxu0 0
    %320 = vmatprep.subr.bf16.mxu0 0
    %321 = vmatpush1.bf16.msra.mxu0 0
    %322 = vmatprep.subr.bf16.mxu0 0
    %323 = vmatpush1.bf16.msra.mxu0 0
    %324 = vmatprep.subr.bf16.mxu0 0
    %325 = vmatpush1.bf16.msra.mxu0 0
    %326 = vmatprep.subr.bf16.mxu0 0
    %327 = vmatpush1.bf16.msra.mxu0 0
    %328 = vmatprep.mubr.bf16.mxu0 0
    %329 = vmatmul.mubr.bf16.gmra.mrb[0].mxu0 %v253
    %v330 = vpop.f32.mrb[0].mxu0
    %v331 = vadd.f32 0.0, %v330
    %v332 = vpop.f32.mrb[0].mxu0
    %v333 = vadd.f32 0.0, %v332
    %v334 = vpop.f32.mrb[0].mxu0
    %v335 = vpop.f32.mrb[0].mxu0
    %336 = vdwg.mxu0
    %v337 = vld [vmem:[%s2] sm:$0xff]
    %v338 = vld [vmem:[%s2 + $0x8] sm:$0xff]
    %v339 = vld [vmem:[%s2 + $0x10] sm:$0xff]
    %v340 = vld [vmem:[%s2 + $0x18] sm:$0xff]
    %v341 = vld [vmem:[%s2 + $0x20] sm:$0xff]
    %v342 = vld [vmem:[%s2 + $0x28] sm:$0xff]
    %v343 = vld [vmem:[%s2 + $0x30] sm:$0xff]
    %v344 = vld [vmem:[%s2 + $0x38] sm:$0xff]
    %v346 = vcombine.high %v333, %v333
    %v348 = vunpack.c.l.s4 1966171168
    %v349 = vunpack.c.0.s8 %v348
    %v350 = vlaneseq
    %v351 = vshrl.u32 %v350, 7
    %v352 = vsub.s32 %v349, %v351
    %v353 = vrot.slane %v333, %v352
    %v355 = vunpack.c.l.s4 1966171168
    %v356 = vunpack.c.0.s8 %v355
    %v357 = vlaneseq
    %v358 = vshrl.u32 %v357, 7
    %v359 = vsub.s32 %v356, %v358
    %v360 = vrot.slane %v346, %v359
    %v361 = vcombine.high %v353, %v353
    %v362 = vcombine.high %v360, %v360
    %v364 = vunpack.c.l.s4 1966171168
    %v365 = vunpack.c.0.s8 %v364
    %v366 = vlaneseq
    %v367 = vshrl.u32 %v366, 7
    %v368 = vsub.s32 %v365, %v367
    %v369 = vrot.slane %v353, %v368
    %v371 = vunpack.c.l.s4 1966171168
    %v372 = vunpack.c.0.s8 %v371
    %v373 = vlaneseq
    %v374 = vshrl.u32 %v373, 7
    %v375 = vsub.s32 %v372, %v374
    %v376 = vrot.slane %v360, %v375
    %v378 = vunpack.c.l.s4 1966171168
    %v379 = vunpack.c.0.s8 %v378
    %v380 = vlaneseq
    %v381 = vshrl.u32 %v380, 7
    %v382 = vsub.s32 %v379, %v381
    %v383 = vrot.slane %v361, %v382
    %v385 = vunpack.c.l.s4 1966171168
    %v386 = vunpack.c.0.s8 %v385
    %v387 = vlaneseq
    %v388 = vshrl.u32 %v387, 7
    %v389 = vsub.s32 %v386, %v388
    %v390 = vrot.slane %v362, %v389
    %v391 = vcombine.high %v369, %v369
    %v392 = vcombine.high %v376, %v376
    %v393 = vcombine.high %v383, %v383
    %v394 = vcombine.high %v390, %v390
    %v395 = vlaneseq
    %v396 = vshrl.u32 %v395, 7
    %v397 = vsub.s32 0, %v396
    %v398 = vrot.slane %v369, %v397
    %v399 = vlaneseq
    %v400 = vshrl.u32 %v399, 7
    %v401 = vsub.s32 0, %v400
    %v402 = vrot.slane %v383, %v401
    %v403 = vlaneseq
    %v404 = vshrl.u32 %v403, 7
    %v405 = vsub.s32 0, %v404
    %v406 = vrot.slane %v391, %v405
    %v407 = vlaneseq
    %v408 = vshrl.u32 %v407, 7
    %v409 = vsub.s32 0, %v408
    %v410 = vrot.slane %v393, %v409
    %v411 = vlaneseq
    %v412 = vshrl.u32 %v411, 7
    %v413 = vsub.s32 0, %v412
    %v414 = vrot.slane %v376, %v413
    %v415 = vlaneseq
    %v416 = vshrl.u32 %v415, 7
    %v417 = vsub.s32 0, %v416
    %v418 = vrot.slane %v390, %v417
    %v419 = vlaneseq
    %v420 = vshrl.u32 %v419, 7
    %v421 = vsub.s32 0, %v420
    %v422 = vrot.slane %v392, %v421
    %v423 = vlaneseq
    %v424 = vshrl.u32 %v423, 7
    %v425 = vsub.s32 0, %v424
    %v426 = vrot.slane %v394, %v425
    %v435 = vadd.f32 %v337, %v398
    %v436 = vadd.f32 %v338, %v402
    %v437 = vadd.f32 %v339, %v406
    %v438 = vadd.f32 %v340, %v410
    %v439 = vadd.f32 %v341, %v414
    %v440 = vadd.f32 %v342, %v418
    %v441 = vadd.f32 %v343, %v422
    %v442 = vadd.f32 %v344, %v426
    %v443 = vtanh.pop %v435
    %v444 = vtanh.pop %v436
    %v445 = vtanh.pop %v437
    %v446 = vtanh.pop %v438
    %v447 = vtanh.pop %v439
    %v448 = vtanh.pop %v440
    %v449 = vtanh.pop %v441
    %v450 = vtanh.pop %v442
    %v451 = vld [vmem:[%s9 + $0x5] sm:$0x1]
    %v453 = vlaneseq
    %v454 = vshrl.u32 %v453, 7
    %v455 = vsub.s32 0, %v454
    %v456 = vrot.slane %v451, %v455
    %v458 = vmul.f32 %v443, %v456
    %v459 = vmul.f32 %v444, %v456
    %v460 = vmul.f32 %v445, %v456
    %v461 = vmul.f32 %v446, %v456
    %v462 = vmul.f32 %v447, %v456
    %v463 = vmul.f32 %v448, %v456
    %v464 = vmul.f32 %v449, %v456
    %v465 = vmul.f32 %v450, %v456
    %v466 = vsel %vm251, %v458, 0.0
    %467 = vadd.xlane.f32.xlu0 %v466
    %v468 = vpop.xlane.xlu0 %467
    %v469 = vsel %vm251, %v459, 0.0
    %470 = vadd.xlane.f32.xlu0 %v469
    %v471 = vpop.xlane.xlu0 %470
    %v472 = vsel %vm251, %v460, 0.0
    %473 = vadd.xlane.f32.xlu0 %v472
    %v474 = vpop.xlane.xlu0 %473
    %v475 = vsel %vm251, %v461, 0.0
    %476 = vadd.xlane.f32.xlu0 %v475
    %v477 = vpop.xlane.xlu0 %476
    %v478 = vsel %vm251, %v462, 0.0
    %479 = vadd.xlane.f32.xlu0 %v478
    %v480 = vpop.xlane.xlu0 %479
    %v481 = vsel %vm251, %v463, 0.0
    %482 = vadd.xlane.f32.xlu0 %v481
    %v483 = vpop.xlane.xlu0 %482
    %v484 = vsel %vm251, %v464, 0.0
    %485 = vadd.xlane.f32.xlu0 %v484
    %v486 = vpop.xlane.xlu0 %485
    %v487 = vsel %vm251, %v465, 0.0
    %488 = vadd.xlane.f32.xlu0 %v487
    %v489 = vpop.xlane.xlu0 %488
    %v498 = vlaneseq
    %v499 = vshrl.u32 %v498, 7
    %v500 = vsub.s32 %v118, %v499
    %v501 = vrot.slane %v468, %v500
    %v502 = vlaneseq
    %v503 = vshrl.u32 %v502, 7
    %v504 = vsub.s32 %v118, %v503
    %v505 = vrot.slane %v471, %v504
    %v506 = vlaneseq
    %v507 = vshrl.u32 %v506, 7
    %v508 = vsub.s32 %v118, %v507
    %v509 = vrot.slane %v474, %v508
    %v510 = vlaneseq
    %v511 = vshrl.u32 %v510, 7
    %v512 = vsub.s32 %v118, %v511
    %v513 = vrot.slane %v477, %v512
    %v514 = vlaneseq
    %v515 = vshrl.u32 %v514, 7
    %v516 = vsub.s32 %v118, %v515
    %v517 = vrot.slane %v480, %v516
    %v518 = vlaneseq
    %v519 = vshrl.u32 %v518, 7
    %v520 = vsub.s32 %v118, %v519
    %v521 = vrot.slane %v483, %v520
    %v522 = vlaneseq
    %v523 = vshrl.u32 %v522, 7
    %v524 = vsub.s32 %v118, %v523
    %v525 = vrot.slane %v486, %v524
    %v526 = vlaneseq
    %v527 = vshrl.u32 %v526, 7
    %v528 = vsub.s32 %v118, %v527
    %v529 = vrot.slane %v489, %v528
    %vm530 = vcmask 1041409
    %v531 = vsel %vm530, %v505, %v501
    %vm532 = vcmask 1042434
    %v533 = vsel %vm532, %v509, %v531
    %vm534 = vcmask 1043459
    %v535 = vsel %vm534, %v513, %v533
    %vm536 = vcmask 1044484
    %v537 = vsel %vm536, %v517, %v535
    %vm538 = vcmask 1045509
    %v539 = vsel %vm538, %v521, %v537
    %vm540 = vcmask 1046534
    %v541 = vsel %vm540, %v525, %v539
    %vm542 = vcmask 1047559
    %v543 = vsel %vm542, %v529, %v541
    %vm545 = vcmask 64512
    %v546 = vsel %vm545, %v543, -inf
    %547 = vmax.xlane.f32.xlu0 %v546
    %v548 = vpop.xlane.xlu0 %547
    %v550 = vlaneseq
    %v551 = vshrl.u32 %v550, 7
    %v552 = vsub.s32 0, %v551
    %v553 = vrot.slane %v548, %v552
    %v554 = vlaneseq
    %v555 = vshrl.u32 %v554, 7
    %v556 = vsub.s32 1, %v555
    %v557 = vrot.slane %v548, %v556
    %v558 = vlaneseq
    %v559 = vshrl.u32 %v558, 7
    %v560 = vsub.s32 2, %v559
    %v561 = vrot.slane %v548, %v560
    %v562 = vlaneseq
    %v563 = vshrl.u32 %v562, 7
    %v564 = vsub.s32 3, %v563
    %v565 = vrot.slane %v548, %v564
    %v566 = vlaneseq
    %v567 = vshrl.u32 %v566, 7
    %v568 = vsub.s32 4, %v567
    %v569 = vrot.slane %v548, %v568
    %v570 = vlaneseq
    %v571 = vshrl.u32 %v570, 7
    %v572 = vsub.s32 5, %v571
    %v573 = vrot.slane %v548, %v572
    %v574 = vlaneseq
    %v575 = vshrl.u32 %v574, 7
    %v576 = vsub.s32 6, %v575
    %v577 = vrot.slane %v548, %v576
    %v578 = vlaneseq
    %v579 = vshrl.u32 %v578, 7
    %v580 = vsub.s32 7, %v579
    %v581 = vrot.slane %v548, %v580
    %v590 = vsub.f32 %v468, %v553
    %v591 = vsub.f32 %v471, %v557
    %v592 = vsub.f32 %v474, %v561
    %v593 = vsub.f32 %v477, %v565
    %v594 = vsub.f32 %v480, %v569
    %v595 = vsub.f32 %v483, %v573
    %v596 = vsub.f32 %v486, %v577
    %v597 = vsub.f32 %v489, %v581
    %v598 = vmul.f32 %v590, 1.442695
    %v599 = vpow.pop %v598
    %v600 = vmul.f32 %v591, 1.442695
    %v601 = vpow.pop %v600
    %v602 = vmul.f32 %v592, 1.442695
    %v603 = vpow.pop %v602
    %v604 = vmul.f32 %v593, 1.442695
    %v605 = vpow.pop %v604
    %v606 = vmul.f32 %v594, 1.442695
    %v607 = vpow.pop %v606
    %v608 = vmul.f32 %v595, 1.442695
    %v609 = vpow.pop %v608
    %v610 = vmul.f32 %v596, 1.442695
    %v611 = vpow.pop %v610
    %v612 = vmul.f32 %v597, 1.442695
    %v613 = vpow.pop %v612
    %622 = vset.pattern.permute.xlu0 0
    %623 = vperm.xlu0 %622, %v599
    %v624 = vpop.permute.xlu0 %623
    %625 = vset.pattern.permute.xlu0 0
    %626 = vperm.xlu0 %625, %v601
    %v627 = vpop.permute.xlu0 %626
    %628 = vset.pattern.permute.xlu0 0
    %629 = vperm.xlu0 %628, %v603
    %v630 = vpop.permute.xlu0 %629
    %631 = vset.pattern.permute.xlu0 0
    %632 = vperm.xlu0 %631, %v605
    %v633 = vpop.permute.xlu0 %632
    %634 = vset.pattern.permute.xlu0 0
    %635 = vperm.xlu0 %634, %v607
    %v636 = vpop.permute.xlu0 %635
    %637 = vset.pattern.permute.xlu0 0
    %638 = vperm.xlu0 %637, %v609
    %v639 = vpop.permute.xlu0 %638
    %640 = vset.pattern.permute.xlu0 0
    %641 = vperm.xlu0 %640, %v611
    %v642 = vpop.permute.xlu0 %641
    %643 = vset.pattern.permute.xlu0 0
    %644 = vperm.xlu0 %643, %v613
    %v645 = vpop.permute.xlu0 %644
    %v646 = vlaneseq
    %v647 = vshrl.u32 %v646, 7
    %v648 = vsub.s32 %v118, %v647
    %v649 = vrot.slane %v624, %v648
    %v650 = vlaneseq
    %v651 = vshrl.u32 %v650, 7
    %v652 = vsub.s32 %v118, %v651
    %v653 = vrot.slane %v627, %v652
    %v654 = vlaneseq
    %v655 = vshrl.u32 %v654, 7
    %v656 = vsub.s32 %v118, %v655
    %v657 = vrot.slane %v630, %v656
    %v658 = vlaneseq
    %v659 = vshrl.u32 %v658, 7
    %v660 = vsub.s32 %v118, %v659
    %v661 = vrot.slane %v633, %v660
    %v662 = vlaneseq
    %v663 = vshrl.u32 %v662, 7
    %v664 = vsub.s32 %v118, %v663
    %v665 = vrot.slane %v636, %v664
    %v666 = vlaneseq
    %v667 = vshrl.u32 %v666, 7
    %v668 = vsub.s32 %v118, %v667
    %v669 = vrot.slane %v639, %v668
    %v670 = vlaneseq
    %v671 = vshrl.u32 %v670, 7
    %v672 = vsub.s32 %v118, %v671
    %v673 = vrot.slane %v642, %v672
    %v674 = vlaneseq
    %v675 = vshrl.u32 %v674, 7
    %v676 = vsub.s32 %v118, %v675
    %v677 = vrot.slane %v645, %v676
    %v678 = vsel %vm530, %v653, %v649
    %v679 = vsel %vm532, %v657, %v678
    %v680 = vsel %vm534, %v661, %v679
    %v681 = vsel %vm536, %v665, %v680
    %v682 = vsel %vm538, %v669, %v681
    %v683 = vsel %vm540, %v673, %v682
    %v684 = vsel %vm542, %v677, %v683
    %v686 = vsel %vm545, %v684, 0.0
    %687 = vadd.xlane.f32.xlu0 %v686
    %v688 = vpop.xlane.xlu0 %687
    %v690 = vlaneseq
    %v691 = vshrl.u32 %v690, 7
    %v692 = vsub.s32 0, %v691
    %v693 = vrot.slane %v688, %v692
    %v694 = vlaneseq
    %v695 = vshrl.u32 %v694, 7
    %v696 = vsub.s32 1, %v695
    %v697 = vrot.slane %v688, %v696
    %v698 = vlaneseq
    %v699 = vshrl.u32 %v698, 7
    %v700 = vsub.s32 2, %v699
    %v701 = vrot.slane %v688, %v700
    %v702 = vlaneseq
    %v703 = vshrl.u32 %v702, 7
    %v704 = vsub.s32 3, %v703
    %v705 = vrot.slane %v688, %v704
    %v706 = vlaneseq
    %v707 = vshrl.u32 %v706, 7
    %v708 = vsub.s32 4, %v707
    %v709 = vrot.slane %v688, %v708
    %v710 = vlaneseq
    %v711 = vshrl.u32 %v710, 7
    %v712 = vsub.s32 5, %v711
    %v713 = vrot.slane %v688, %v712
    %v714 = vlaneseq
    %v715 = vshrl.u32 %v714, 7
    %v716 = vsub.s32 6, %v715
    %v717 = vrot.slane %v688, %v716
    %v718 = vlaneseq
    %v719 = vshrl.u32 %v718, 7
    %v720 = vsub.s32 7, %v719
    %v721 = vrot.slane %v688, %v720
    %v730 = vrcp.pop %v693
    %v731 = vmul.f32 %v599, %v730
    %v732 = vrcp.pop %v697
    %v733 = vmul.f32 %v601, %v732
    %v734 = vrcp.pop %v701
    %v735 = vmul.f32 %v603, %v734
    %v736 = vrcp.pop %v705
    %v737 = vmul.f32 %v605, %v736
    %v738 = vrcp.pop %v709
    %v739 = vmul.f32 %v607, %v738
    %v740 = vrcp.pop %v713
    %v741 = vmul.f32 %v609, %v740
    %v742 = vrcp.pop %v717
    %v743 = vmul.f32 %v611, %v742
    %v744 = vrcp.pop %v721
    %v745 = vmul.f32 %v613, %v744
    %747 = vset.pattern.permute.xlu0 0
    %748 = vperm.xlu0 %747, %v731
    %v749 = vpop.permute.xlu0 %748
    %752 = vset.pattern.permute.xlu0 0
    %753 = vperm.xlu0 %752, %v733
    %v754 = vpop.permute.xlu0 %753
    %757 = vset.pattern.permute.xlu0 0
    %758 = vperm.xlu0 %757, %v735
    %v759 = vpop.permute.xlu0 %758
    %762 = vset.pattern.permute.xlu0 0
    %763 = vperm.xlu0 %762, %v737
    %v764 = vpop.permute.xlu0 %763
    %767 = vset.pattern.permute.xlu0 0
    %768 = vperm.xlu0 %767, %v739
    %v769 = vpop.permute.xlu0 %768
    %772 = vset.pattern.permute.xlu0 0
    %773 = vperm.xlu0 %772, %v741
    %v774 = vpop.permute.xlu0 %773
    %777 = vset.pattern.permute.xlu0 0
    %778 = vperm.xlu0 %777, %v743
    %v779 = vpop.permute.xlu0 %778
    %782 = vset.pattern.permute.xlu0 0
    %783 = vperm.xlu0 %782, %v745
    %v784 = vpop.permute.xlu0 %783
    %v786 = vmul.f32 %v749, %v106
    %v787 = vmul.f32 %v754, %v107
    %v788 = vmul.f32 %v759, %v108
    %v789 = vmul.f32 %v764, %v109
    %v790 = vmul.f32 %v769, %v110
    %v791 = vmul.f32 %v774, %v111
    %v792 = vmul.f32 %v779, %v112
    %v793 = vmul.f32 %v784, %v113
    %v794 = vsel %vm251, %v786, 0.0
    %v795 = vrot.slane %v794, 4
    %v796 = vadd.f32 %v794, %v795
    %v797 = vrot.slane %v796, 2
    %v798 = vadd.f32 %v796, %v797
    %v799 = vrot.slane %v798, 1
    %v800 = vadd.f32 %v798, %v799
    %v801 = vsel %vm251, %v787, 0.0
    %v802 = vrot.slane %v801, 4
    %v803 = vadd.f32 %v801, %v802
    %v804 = vrot.slane %v803, 2
    %v805 = vadd.f32 %v803, %v804
    %v806 = vrot.slane %v805, 1
    %v807 = vadd.f32 %v805, %v806
    %v808 = vsel %vm251, %v788, 0.0
    %v809 = vrot.slane %v808, 4
    %v810 = vadd.f32 %v808, %v809
    %v811 = vrot.slane %v810, 2
    %v812 = vadd.f32 %v810, %v811
    %v813 = vrot.slane %v812, 1
    %v814 = vadd.f32 %v812, %v813
    %v815 = vsel %vm251, %v789, 0.0
    %v816 = vrot.slane %v815, 4
    %v817 = vadd.f32 %v815, %v816
    %v818 = vrot.slane %v817, 2
    %v819 = vadd.f32 %v817, %v818
    %v820 = vrot.slane %v819, 1
    %v821 = vadd.f32 %v819, %v820
    %v822 = vsel %vm251, %v790, 0.0
    %v823 = vrot.slane %v822, 4
    %v824 = vadd.f32 %v822, %v823
    %v825 = vrot.slane %v824, 2
    %v826 = vadd.f32 %v824, %v825
    %v827 = vrot.slane %v826, 1
    %v828 = vadd.f32 %v826, %v827
    %v829 = vsel %vm251, %v791, 0.0
    %v830 = vrot.slane %v829, 4
    %v831 = vadd.f32 %v829, %v830
    %v832 = vrot.slane %v831, 2
    %v833 = vadd.f32 %v831, %v832
    %v834 = vrot.slane %v833, 1
    %v835 = vadd.f32 %v833, %v834
    %v836 = vsel %vm251, %v792, 0.0
    %v837 = vrot.slane %v836, 4
    %v838 = vadd.f32 %v836, %v837
    %v839 = vrot.slane %v838, 2
    %v840 = vadd.f32 %v838, %v839
    %v841 = vrot.slane %v840, 1
    %v842 = vadd.f32 %v840, %v841
    %v843 = vsel %vm251, %v793, 0.0
    %v844 = vrot.slane %v843, 4
    %v845 = vadd.f32 %v843, %v844
    %v846 = vrot.slane %v845, 2
    %v847 = vadd.f32 %v845, %v846
    %v848 = vrot.slane %v847, 1
    %v849 = vadd.f32 %v847, %v848
    %v850 = vpack.c.bf16 %v800, %v800
    %v851 = vpack.c.bf16 %v807, %v807
    %v852 = vpack.c.bf16 %v814, %v814
    %v853 = vpack.c.bf16 %v821, %v821
    %v854 = vpack.c.bf16 %v828, %v828
    %v855 = vpack.c.bf16 %v835, %v835
    %v856 = vpack.c.bf16 %v842, %v842
    %v857 = vpack.c.bf16 %v849, %v849
    %v858 = vld [vmem:[#allocation8] sm:$0xff]
    %v859 = vld [vmem:[#allocation8 + $0x8] sm:$0xff]
    %v860 = vld [vmem:[#allocation8 + $0x10] sm:$0xff]
    %v861 = vld [vmem:[#allocation8 + $0x18] sm:$0xff]
    %v862 = vld [vmem:[#allocation8 + $0x20] sm:$0xff]
    %v863 = vld [vmem:[#allocation8 + $0x28] sm:$0xff]
    %v864 = vld [vmem:[#allocation8 + $0x30] sm:$0xff]
    %v865 = vld [vmem:[#allocation8 + $0x38] sm:$0xff]
    %v874 = vunpack.c.l.b16 %v850
    %v875 = vunpack.c.l.b16 %v851
    %v876 = vunpack.c.l.b16 %v852
    %v877 = vunpack.c.l.b16 %v853
    %v878 = vunpack.c.l.b16 %v854
    %v879 = vunpack.c.l.b16 %v855
    %v880 = vunpack.c.l.b16 %v856
    %v881 = vunpack.c.l.b16 %v857
    %v882 = vsel %vm530, %v875, %v874
    %v883 = vsel %vm532, %v876, %v882
    %v884 = vsel %vm534, %v877, %v883
    %v885 = vsel %vm536, %v878, %v884
    %v886 = vsel %vm538, %v879, %v885
    %v887 = vsel %vm540, %v880, %v886
    %v888 = vsel %vm542, %v881, %v887
    %v889 = vpack.c.b16 %v888, %v888
    %v898 = vunpack.c.l.b16 %v858
    %v899 = vunpack.c.h.b16 %v858
    %v900 = vunpack.c.l.b16 %v859
    %v901 = vunpack.c.h.b16 %v859
    %v902 = vunpack.c.l.b16 %v860
    %v903 = vunpack.c.h.b16 %v860
    %v904 = vunpack.c.l.b16 %v861
    %v905 = vunpack.c.h.b16 %v861
    %v906 = vunpack.c.l.b16 %v862
    %v907 = vunpack.c.h.b16 %v862
    %v908 = vunpack.c.l.b16 %v863
    %v909 = vunpack.c.h.b16 %v863
    %v910 = vunpack.c.l.b16 %v864
    %v911 = vunpack.c.h.b16 %v864
    %v912 = vunpack.c.l.b16 %v865
    %v913 = vunpack.c.h.b16 %v865
    %v914 = vpack.c.b16 %v902, %v898
    %v915 = vpack.c.b16 %v903, %v899
    %v916 = vpack.c.b16 %v904, %v900
    %v917 = vpack.c.b16 %v905, %v901
    %v918 = vpack.c.b16 %v910, %v906
    %v919 = vpack.c.b16 %v911, %v907
    %v920 = vpack.c.b16 %v912, %v908
    %v921 = vpack.c.b16 %v913, %v909
    %v931 = vsel %vm251, %v889, 0
    %933 = vmatprep.subr.bf16.mxu0 %v915
    %934 = vmatpush1.bf16.msra.mxu0 %v914
    %935 = vmatprep.subr.bf16.mxu0 %v919
    %936 = vmatpush1.bf16.msra.mxu0 %v918
    %937 = vmatprep.subr.bf16.mxu0 0
    %938 = vmatpush1.bf16.msra.mxu0 0
    %939 = vmatprep.subr.bf16.mxu0 0
    %940 = vmatpush1.bf16.msra.mxu0 0
    %941 = vmatprep.subr.bf16.mxu0 0
    %942 = vmatpush1.bf16.msra.mxu0 0
    %943 = vmatprep.subr.bf16.mxu0 0
    %944 = vmatpush1.bf16.msra.mxu0 0
    %945 = vmatprep.subr.bf16.mxu0 0
    %946 = vmatpush1.bf16.msra.mxu0 0
    %947 = vmatprep.subr.bf16.mxu0 0
    %948 = vmatpush1.bf16.msra.mxu0 0
    %949 = vmatprep.subr.bf16.mxu0 0
    %950 = vmatpush1.bf16.msra.mxu0 0
    %951 = vmatprep.subr.bf16.mxu0 0
    %952 = vmatpush1.bf16.msra.mxu0 0
    %953 = vmatprep.subr.bf16.mxu0 0
    %954 = vmatpush1.bf16.msra.mxu0 0
    %955 = vmatprep.subr.bf16.mxu0 0
    %956 = vmatpush1.bf16.msra.mxu0 0
    %957 = vmatprep.subr.bf16.mxu0 0
    %958 = vmatpush1.bf16.msra.mxu0 0
    %959 = vmatprep.subr.bf16.mxu0 0
    %960 = vmatpush1.bf16.msra.mxu0 0
    %961 = vmatprep.subr.bf16.mxu0 0
    %962 = vmatpush1.bf16.msra.mxu0 0
    %963 = vmatprep.subr.bf16.mxu0 0
    %964 = vmatpush1.bf16.msra.mxu0 0
    %965 = vmatprep.mubr.bf16.mxu0 0
    %966 = vmatmul.mubr.bf16.gmra.mrb[0].mxu0 %v931
    %v967 = vpop.f32.mrb[0].mxu0
    %v968 = vadd.f32 0.0, %v967
    %v969 = vpop.f32.mrb[0].mxu0
    %v970 = vadd.f32 0.0, %v969
    %v971 = vpop.f32.mrb[0].mxu0
    %v972 = vpop.f32.mrb[0].mxu0
    %973 = vdwg.mxu0
    %974 = vmatprep.subr.bf16.mxu0 %v917
    %975 = vmatpush1.bf16.msra.mxu0 %v916
    %976 = vmatprep.subr.bf16.mxu0 %v921
    %977 = vmatpush1.bf16.msra.mxu0 %v920
    %978 = vmatprep.subr.bf16.mxu0 0
    %979 = vmatpush1.bf16.msra.mxu0 0
    %980 = vmatprep.subr.bf16.mxu0 0
    %981 = vmatpush1.bf16.msra.mxu0 0
    %982 = vmatprep.subr.bf16.mxu0 0
    %983 = vmatpush1.bf16.msra.mxu0 0
    %984 = vmatprep.subr.bf16.mxu0 0
    %985 = vmatpush1.bf16.msra.mxu0 0
    %986 = vmatprep.subr.bf16.mxu0 0
    %987 = vmatpush1.bf16.msra.mxu0 0
    %988 = vmatprep.subr.bf16.mxu0 0
    %989 = vmatpush1.bf16.msra.mxu0 0
    %990 = vmatprep.subr.bf16.mxu0 0
    %991 = vmatpush1.bf16.msra.mxu0 0
    %992 = vmatprep.subr.bf16.mxu0 0
    %993 = vmatpush1.bf16.msra.mxu0 0
    %994 = vmatprep.subr.bf16.mxu0 0
    %995 = vmatpush1.bf16.msra.mxu0 0
    %996 = vmatprep.subr.bf16.mxu0 0
    %997 = vmatpush1.bf16.msra.mxu0 0
    %998 = vmatprep.subr.bf16.mxu0 0
    %999 = vmatpush1.bf16.msra.mxu0 0
    %1000 = vmatprep.subr.bf16.mxu0 0
    %1001 = vmatpush1.bf16.msra.mxu0 0
    %1002 = vmatprep.subr.bf16.mxu0 0
    %1003 = vmatpush1.bf16.msra.mxu0 0
    %1004 = vmatprep.subr.bf16.mxu0 0
    %1005 = vmatpush1.bf16.msra.mxu0 0
    %1006 = vmatprep.mubr.bf16.mxu0 0
    %1007 = vmatmul.mubr.bf16.gmra.mrb[0].mxu0 %v931
    %v1008 = vpop.f32.mrb[0].mxu0
    %v1009 = vadd.f32 0.0, %v1008
    %v1010 = vpop.f32.mrb[0].mxu0
    %v1011 = vadd.f32 0.0, %v1010
    %v1012 = vpop.f32.mrb[0].mxu0
    %v1013 = vpop.f32.mrb[0].mxu0
    %1014 = vdwg.mxu0
    %v1015 = vld [vmem:[#allocation7] sm:$0xff]
    %v1016 = vld [vmem:[#allocation7 + $0x8] sm:$0xf]
    %v1017 = vld [vmem:[#allocation7 + $0xc] sm:$0xff]
    %v1018 = vld [vmem:[#allocation7 + $0x14] sm:$0xf]
    %v1019 = vld [vmem:[#allocation7 + $0x18] sm:$0xff]
    %v1020 = vld [vmem:[#allocation7 + $0x20] sm:$0xf]
    %v1021 = vld [vmem:[#allocation7 + $0x24] sm:$0xff]
    %v1022 = vld [vmem:[#allocation7 + $0x2c] sm:$0xf]
    %v1031 = vunpack.c.l.b16 %v1015
    %v1032 = vunpack.c.h.b16 %v1015
    %v1033 = vunpack.c.l.b16 %v1016
    %v1034 = vunpack.c.l.b16 %v1017
    %v1035 = vunpack.c.h.b16 %v1017
    %v1036 = vunpack.c.l.b16 %v1018
    %v1037 = vunpack.c.l.b16 %v1019
    %v1038 = vunpack.c.h.b16 %v1019
    %v1039 = vunpack.c.l.b16 %v1020
    %v1040 = vunpack.c.l.b16 %v1021
    %v1041 = vunpack.c.h.b16 %v1021
    %v1042 = vunpack.c.l.b16 %v1022
    %v1043 = vpack.c.b16 %v1034, %v1031
    %v1044 = vpack.c.b16 %v1035, %v1032
    %v1045 = vpack.c.b16 %v1036, %v1033
    %v1046 = vpack.c.b16 %v1040, %v1037
    %v1047 = vpack.c.b16 %v1041, %v1038
    %v1048 = vpack.c.b16 %v1042, %v1039
    %v1056 = vsel %vm251, %v202, 0
    %1058 = vmatprep.subr.bf16.mxu0 %v1044
    %1059 = vmatpush1.bf16.msra.mxu0 %v1043
    %1060 = vmatprep.subr.bf16.mxu0 %v1047
    %1061 = vmatpush1.bf16.msra.mxu0 %v1046
    %1062 = vmatprep.subr.bf16.mxu0 0
    %1063 = vmatpush1.bf16.msra.mxu0 0
    %1064 = vmatprep.subr.bf16.mxu0 0
    %1065 = vmatpush1.bf16.msra.mxu0 0
    %1066 = vmatprep.subr.bf16.mxu0 0
    %1067 = vmatpush1.bf16.msra.mxu0 0
    %1068 = vmatprep.subr.bf16.mxu0 0
    %1069 = vmatpush1.bf16.msra.mxu0 0
    %1070 = vmatprep.subr.bf16.mxu0 0
    %1071 = vmatpush1.bf16.msra.mxu0 0
    %1072 = vmatprep.subr.bf16.mxu0 0
    %1073 = vmatpush1.bf16.msra.mxu0 0
    %1074 = vmatprep.subr.bf16.mxu0 0
    %1075 = vmatpush1.bf16.msra.mxu0 0
    %1076 = vmatprep.subr.bf16.mxu0 0
    %1077 = vmatpush1.bf16.msra.mxu0 0
    %1078 = vmatprep.subr.bf16.mxu0 0
    %1079 = vmatpush1.bf16.msra.mxu0 0
    %1080 = vmatprep.subr.bf16.mxu0 0
    %1081 = vmatpush1.bf16.msra.mxu0 0
    %1082 = vmatprep.subr.bf16.mxu0 0
    %1083 = vmatpush1.bf16.msra.mxu0 0
    %1084 = vmatprep.subr.bf16.mxu0 0
    %1085 = vmatpush1.bf16.msra.mxu0 0
    %1086 = vmatprep.subr.bf16.mxu0 0
    %1087 = vmatpush1.bf16.msra.mxu0 0
    %1088 = vmatprep.subr.bf16.mxu0 0
    %1089 = vmatpush1.bf16.msra.mxu0 0
    %1090 = vmatprep.mubr.bf16.mxu0 0
    %1091 = vmatmul.mubr.bf16.gmra.mrb[0].mxu0 %v1056
    %v1092 = vpop.f32.mrb[0].mxu0
    %v1093 = vadd.f32 %v968, %v1092
    %v1094 = vpop.f32.mrb[0].mxu0
    %v1095 = vadd.f32 %v970, %v1094
    %v1096 = vpop.f32.mrb[0].mxu0
    %v1097 = vpop.f32.mrb[0].mxu0
    %1098 = vdwg.mxu0
    %1099 = vmatprep.subr.bf16.mxu0 0
    %1100 = vmatpush1.bf16.msra.mxu0 %v1045
    %1101 = vmatprep.subr.bf16.mxu0 0
    %1102 = vmatpush1.bf16.msra.mxu0 %v1048
    %1103 = vmatprep.subr.bf16.mxu0 0
    %1104 = vmatpush1.bf16.msra.mxu0 0
    %1105 = vmatprep.subr.bf16.mxu0 0
    %1106 = vmatpush1.bf16.msra.mxu0 0
    %1107 = vmatprep.subr.bf16.mxu0 0
    %1108 = vmatpush1.bf16.msra.mxu0 0
    %1109 = vmatprep.subr.bf16.mxu0 0
    %1110 = vmatpush1.bf16.msra.mxu0 0
    %1111 = vmatprep.subr.bf16.mxu0 0
    %1112 = vmatpush1.bf16.msra.mxu0 0
    %1113 = vmatprep.subr.bf16.mxu0 0
    %1114 = vmatpush1.bf16.msra.mxu0 0
    %1115 = vmatprep.subr.bf16.mxu0 0
    %1116 = vmatpush1.bf16.msra.mxu0 0
    %1117 = vmatprep.subr.bf16.mxu0 0
    %1118 = vmatpush1.bf16.msra.mxu0 0
    %1119 = vmatprep.subr.bf16.mxu0 0
    %1120 = vmatpush1.bf16.msra.mxu0 0
    %1121 = vmatprep.subr.bf16.mxu0 0
    %1122 = vmatpush1.bf16.msra.mxu0 0
    %1123 = vmatprep.subr.bf16.mxu0 0
    %1124 = vmatpush1.bf16.msra.mxu0 0
    %1125 = vmatprep.subr.bf16.mxu0 0
    %1126 = vmatpush1.bf16.msra.mxu0 0
    %1127 = vmatprep.subr.bf16.mxu0 0
    %1128 = vmatpush1.bf16.msra.mxu0 0
    %1129 = vmatprep.subr.bf16.mxu0 0
    %1130 = vmatpush1.bf16.msra.mxu0 0
    %1131 = vmatprep.mubr.bf16.mxu0 0
    %1132 = vmatmul.mubr.bf16.gmra.mrb[0].mxu0 %v1056
    %v1133 = vpop.f32.mrb[0].mxu0
    %v1134 = vadd.f32 %v1009, %v1133
    %v1135 = vpop.f32.mrb[0].mxu0
    %v1136 = vpop.f32.mrb[0].mxu0
    %v1137 = vpop.f32.mrb[0].mxu0
    %1138 = vdwg.mxu0
    %v1139 = vld [vmem:[%s9] sm:$0x7]
    %v1141 = vlaneseq
    %v1142 = vshrl.u32 %v1141, 7
    %v1143 = vsub.s32 0, %v1142
    %v1144 = vrot.slane %v1139, %v1143
    %v1145 = vlaneseq
    %v1146 = vshrl.u32 %v1145, 7
    %v1147 = vsub.s32 1, %v1146
    %v1148 = vrot.slane %v1139, %v1147
    %v1149 = vlaneseq
    %v1150 = vshrl.u32 %v1149, 7
    %v1151 = vsub.s32 2, %v1150
    %v1152 = vrot.slane %v1139, %v1151
    %v1156 = vadd.f32 %v1093, %v1144
    %v1157 = vadd.f32 %v1095, %v1148
    %v1158 = vadd.f32 %v1134, %v1152
    %v1159 = vadd.f32 %v1156, %v290
    %v1160 = vxor.u32 %v1159, 2147483648
    %v1161 = vmul.f32 %v1160, 1.442695
    %v1162 = vpow.pop %v1161
    %v1163 = vadd.f32 %v1162, 1.0
    %v1164 = vrcp.pop %v1163
    %v1165 = vmul.f32 1.0, %v1164
    %v1166 = vadd.f32 %v1157, %v292
    %v1167 = vxor.u32 %v1166, 2147483648
    %v1168 = vmul.f32 %v1167, 1.442695
    %v1169 = vpow.pop %v1168
    %v1170 = vadd.f32 %v1169, 1.0
    %v1171 = vrcp.pop %v1170
    %v1172 = vmul.f32 1.0, %v1171
    %v1173 = vld [vmem:[%s9 + $0x3] sm:$0x1]
    %v1175 = vlaneseq
    %v1176 = vshrl.u32 %v1175, 7
    %v1177 = vsub.s32 0, %v1176
    %v1178 = vrot.slane %v1173, %v1177
    %v1180 = vadd.f32 %v331, %v1178
    %v1181 = vmul.f32 %v1165, %v1180
    %v1182 = vadd.f32 %v1158, %v1181
    %v1183 = vtanh.pop %v1182
    %v1184 = vsub.f32 1.0, %v1172
    %v1185 = vmul.f32 %v1184, %v1183
    %v1186 = vmul.f32 %v1172, %v114
    %v1187 = vadd.f32 %v1185, %v1186
    %v1188 = vpack.c.bf16 %v1187, %v1187
    %v1189 = vld [vmem:[%s8] sm:$0xf]
    %v1190 = vld [vmem:[%s8 + $0x4] sm:$0xf]
    %v1191 = vld [vmem:[%s8 + $0x8] sm:$0xf]
    %v1192 = vld [vmem:[%s8 + $0xc] sm:$0xf]
    %v1197 = vunpack.c.l.b16 %v1189
    %v1198 = vunpack.c.l.b16 %v1190
    %v1199 = vunpack.c.l.b16 %v1191
    %v1200 = vunpack.c.l.b16 %v1192
    %v1201 = vpack.c.b16 %v1198, %v1197
    %v1202 = vpack.c.b16 %v1200, %v1199
    %v1206 = vsel %vm251, %v1188, 0
    %1208 = vmatprep.subr.bf16.mxu0 0
    %1209 = vmatpush1.bf16.msra.mxu0 %v1201
    %1210 = vmatprep.subr.bf16.mxu0 0
    %1211 = vmatpush1.bf16.msra.mxu0 %v1202
    %1212 = vmatprep.subr.bf16.mxu0 0
    %1213 = vmatpush1.bf16.msra.mxu0 0
    %1214 = vmatprep.subr.bf16.mxu0 0
    %1215 = vmatpush1.bf16.msra.mxu0 0
    %1216 = vmatprep.subr.bf16.mxu0 0
    %1217 = vmatpush1.bf16.msra.mxu0 0
    %1218 = vmatprep.subr.bf16.mxu0 0
    %1219 = vmatpush1.bf16.msra.mxu0 0
    %1220 = vmatprep.subr.bf16.mxu0 0
    %1221 = vmatpush1.bf16.msra.mxu0 0
    %1222 = vmatprep.subr.bf16.mxu0 0
    %1223 = vmatpush1.bf16.msra.mxu0 0
    %1224 = vmatprep.subr.bf16.mxu0 0
    %1225 = vmatpush1.bf16.msra.mxu0 0
    %1226 = vmatprep.subr.bf16.mxu0 0
    %1227 = vmatpush1.bf16.msra.mxu0 0
    %1228 = vmatprep.subr.bf16.mxu0 0
    %1229 = vmatpush1.bf16.msra.mxu0 0
    %1230 = vmatprep.subr.bf16.mxu0 0
    %1231 = vmatpush1.bf16.msra.mxu0 0
    %1232 = vmatprep.subr.bf16.mxu0 0
    %1233 = vmatpush1.bf16.msra.mxu0 0
    %1234 = vmatprep.subr.bf16.mxu0 0
    %1235 = vmatpush1.bf16.msra.mxu0 0
    %1236 = vmatprep.subr.bf16.mxu0 0
    %1237 = vmatpush1.bf16.msra.mxu0 0
    %1238 = vmatprep.subr.bf16.mxu0 0
    %1239 = vmatpush1.bf16.msra.mxu0 0
    %1240 = vmatprep.mubr.bf16.mxu0 0
    %1241 = vmatmul.mubr.bf16.gmra.mrb[0].mxu0 %v1206
    %v1242 = vpop.f32.mrb[0].mxu0
    %v1243 = vadd.f32 %v1011, %v1242
    %v1244 = vpop.f32.mrb[0].mxu0
    %v1245 = vpop.f32.mrb[0].mxu0
    %v1246 = vpop.f32.mrb[0].mxu0
    %1247 = vdwg.mxu0
    %v1248 = vld [vmem:[%s9 + $0x4] sm:$0x1]
    %v1250 = vlaneseq
    %v1251 = vshrl.u32 %v1250, 7
    %v1252 = vsub.s32 0, %v1251
    %v1253 = vrot.slane %v1248, %v1252
    %v1255 = vadd.f32 %v1243, %v1253
    %1256 = vst [vmem:[#allocation11] sm:$0xff] %v1255
    %1257 = vst [vmem:[#allocation12] sm:$0xff] %v1187
    // Predicated region
    $region62: #{tpu_custom_call.1} parent=1 // pred_check
      _
    $region63: #{tpu_custom_call.1} parent=1 // pred_check_branch
      %1259 = sbr.rel (0) target = $region65
    $region64: #{tpu_custom_call.1} parent=1 // pred_region
      %s1261 = ssub.s32 128, 128
      %1262 = vsyncadd [#allocation4], %s1261
      %s1264 = sshll.u32 [#allocation11], 4
      %s1265 = int_to_ptr.vmem [resolvable:$true] %s1264
      %1267 = dma.vmem_to_hbm [thread:$0]  %s1265, 128, %s10, [#allocation4]
    $region65: #{tpu_custom_call.1} parent=1 // pred_fallthru
      _
    // Predicated region
    $region66: #{tpu_custom_call.1} parent=1 // pred_check
      _
    $region67: #{tpu_custom_call.1} parent=1 // pred_check_branch
      %1269 = sbr.rel (0) target = $region69
    $region68: #{tpu_custom_call.1} parent=1 // pred_region
      %s1271 = ssub.s32 128, 128
      %1272 = vsyncadd [#allocation13], %s1271
      %s1274 = sshll.u32 [#allocation12], 4
      %s1275 = int_to_ptr.vmem [resolvable:$true] %s1274
      %1277 = dma.vmem_to_hbm [thread:$0]  %s1275, 128, %s11, [#allocation13]
    $region69: #{tpu_custom_call.1} parent=1 // pred_fallthru
      _
    // Predicated region
    $region70: #{tpu_custom_call.1} parent=1 // pred_check
      _
    $region71: #{tpu_custom_call.1} parent=1 // pred_check_branch
      %1279 = sbr.rel (0) target = $region73
    $region72: #{tpu_custom_call.1} parent=1 // pred_region
      %1280 = dma.done [#allocation4], 128
    $region73: #{tpu_custom_call.1} parent=1 // pred_fallthru
      _
    // Predicated region
    $region74: #{tpu_custom_call.1} parent=1 // pred_check
      _
    $region75: #{tpu_custom_call.1} parent=1 // pred_check_branch
      %1282 = sbr.rel (0) target = $region77
    $region76: #{tpu_custom_call.1} parent=1 // pred_region
      %1283 = dma.done [#allocation13], 128
    $region77: #{tpu_custom_call.1} parent=1 // pred_fallthru
      _
    %1284 = vsyncpa [#allocation3], 1
    %1285 = vsyncpa [#allocation6], 1
    %1286 = vsyncpa [#allocation9], 1
    %1287 = vsyncpa [#allocation4], 1
    %1288 = vsyncpa [#allocation13], 1

</llo_original>
